<compile_context>
chip_gen: v5e
topology: v5e:2x2
jax: 0.10.0
libtpu: 0.0.40
codegen_flags: <defaults>
</compile_context>

<pallas_src>
import functools

import jax
import jax.numpy as jnp
from jax.experimental import pallas as pl
from jax.experimental.pallas import tpu as pltpu


def _round_up(x, m):
    return ((x + m - 1) // m) * m


def _choose_block_b(batch, block_b):
    """Batch tile: multiple of 8, <= padded batch, and split into >= 2 grid
    steps when there is enough work (v7x has 2 TensorCores sharding 'parallel'
    grid steps)."""
    block_b = max(8, _round_up(int(block_b), 8))
    full = _round_up(max(int(batch), 1), 8)
    block_b = min(block_b, full)
    if block_b >= full and full >= 16:
        block_b = _round_up(full // 2, 8)
    return block_b


# ----------------------------- Pallas kernel --------------------------------
def ncf_kernel(ids_ref, tab_ref, w1_ref, b1_ref, w2_ref, b2_ref,
               w3_ref, b3_ref, wo_ref, bo_ref, o_ref, *, num_users, mxu_dtype):
    block_b = ids_ref.shape[0]
    vocab = tab_ref.shape[0]                       # num_users + num_items

    ids = ids_ref[...]                             # (block_b, 2) int32
    uid = ids[:, 0:1]                              # user id
    iid = ids[:, 1:2] + num_users                  # item id -> combined-table row

    # Fused gather + concat: combined one-hot (two ones per row) against the
    # block-diagonal [user | item] table.  One K-dense MXU matmul directly
    # yields the concatenated (block_b, 2E) activation.
    col = jax.lax.broadcasted_iota(jnp.int32, (block_b, vocab), 1)
    onehot = ((col == uid) | (col == iid)).astype(mxu_dtype)
    x = jnp.dot(onehot, tab_ref[...], preferred_element_type=jnp.float32)

    # MLP: MXU dots with mxu_dtype operands + f32 accumulate; bias/ReLU stay
    # in f32 on the VPU.  nn.Dropout == identity in inference mode.
    def dense_relu(h, w_ref, b_ref):
        y = jnp.dot(h.astype(mxu_dtype), w_ref[...],
                    preferred_element_type=jnp.float32) + b_ref[...]
        return jnp.maximum(y, 0.0)

    h = dense_relu(x, w1_ref, b1_ref)              # (block_b, 64)
    h = dense_relu(h, w2_ref, b2_ref)              # (block_b, 32)
    h = dense_relu(h, w3_ref, b3_ref)              # (block_b, 16)

    # Output layer (16 -> 1) as an M=1 matmul contracting the last dims of both
    # operands -> (1, block_b): batch lands on the lane axis (lane-dense store).
    scores = jnp.einsum("ok,bk->ob", wo_ref[...], h.astype(mxu_dtype),
                        preferred_element_type=jnp.float32)     # (1, block_b)
    o_ref[...] = (scores + bo_ref[...]).reshape(o_ref.shape)


# ------------------------------- Wrapper -------------------------------------
def ncf_forward(user_ids, item_ids, user_table, item_table, layer_params,
                block_b=1024, mxu_dtype=jnp.float32):
    """Full NCF forward.  Streams id pairs in batch tiles; the embedding table
    and MLP weights stay resident in VMEM (single-buffered)."""
    (w1, b1), (w2, b2), (w3, b3), (wo, bo) = layer_params
    num_users, emb_dim = user_table.shape
    num_items = item_table.shape[0]
    batch = user_ids.shape[0]
    mxu_dtype = jnp.dtype(mxu_dtype)

    block_b = _choose_block_b(batch, block_b)
    padded_b = _round_up(max(batch, 1), block_b)
    num_blocks = padded_b // block_b
    pad = padded_b - batch

    # Single streamed input: (padded_b, 2) int32 -> one DMA per grid step.
    ids = jnp.stack([user_ids.astype(jnp.int32),
                     item_ids.astype(jnp.int32)], axis=-1)
    ids = jnp.pad(ids, ((0, pad), (0, 0)))

    # Block-diagonal combined table: row u -> [user_emb(u) | 0],
    # row num_users + i -> [0 | item_emb(i)].
    comb = jnp.zeros((num_users + num_items, 2 * emb_dim), mxu_dtype)
    comb = comb.at[:num_users, :emb_dim].set(user_table.astype(mxu_dtype))
    comb = comb.at[num_users:, emb_dim:].set(item_table.astype(mxu_dtype))

    weights = [
        comb,
        w1.astype(mxu_dtype), b1.astype(jnp.float32),
        w2.astype(mxu_dtype), b2.astype(jnp.float32),
        w3.astype(mxu_dtype), b3.astype(jnp.float32),
        wo.reshape(1, -1).astype(mxu_dtype), bo.reshape(1, 1).astype(jnp.float32),
    ]

    resident_bytes = sum(int(a.size) * a.dtype.itemsize for a in weights)
    # TODO(synk): for realistic NCF vocabularies (>~50-100K rows) the resident
    # table + one-hot MXU gather no longer fits VMEM / the VPU compare budget;
    # switch to HBM-resident tables (memory_space=pl.ANY) with scalar-prefetched
    # ids + make_async_copy row gather, or gather via jnp.take outside the
    # kernel and stream (block_b, 2E) embeddings instead.
    if resident_bytes > (40 << 20):
        raise NotImplementedError(
            "Resident one-hot gather path only supports small tables; "
            f"resident operands = {resident_bytes / 2**20:.1f} MiB.")

    def resident(arr):
        # Full-array block + constant index_map -> loaded once, stays in VMEM.
        # Buffered(1): grid-invariant operands need no double-buffering.
        index_map = lambda i, _n=arr.ndim: (0,) * _n
        if hasattr(pl, "Buffered"):
            try:
                return pl.BlockSpec(arr.shape, index_map,
                                    pipeline_mode=pl.Buffered(1))
            except TypeError:
                pass
        return pl.BlockSpec(arr.shape, index_map)

    ids_spec = pl.BlockSpec((block_b, 2), lambda i: (i, 0))
    out_spec = pl.BlockSpec((1, 1, block_b), lambda i: (i, 0, 0))

    # Explicit VMEM budget: resident operands (1 buffer) + double-buffered
    # streamed ids/out + in-kernel activations, with 2x headroom.
    vocab_pad = _round_up(num_users + num_items, 128)
    act_cols = vocab_pad + 2 * emb_dim + 64 + 32 + 16 + 128
    est_bytes = (resident_bytes
                 + 2 * block_b * 128 * 4          # ids blocks (lane-padded int32)
                 + 2 * block_b * 4                # output blocks (lane-dense)
                 + block_b * act_cols * 4)        # activations (rough, f32)
    vmem_limit = int(min(max(2 * est_bytes + (2 << 20), 16 << 20), 64 << 20))

    out = pl.pallas_call(
        functools.partial(ncf_kernel, num_users=num_users, mxu_dtype=mxu_dtype),
        out_shape=jax.ShapeDtypeStruct((num_blocks, 1, block_b), jnp.float32),
        grid=(num_blocks,),
        in_specs=[ids_spec] + [resident(a) for a in weights],
        out_specs=out_spec,
        compiler_params=pltpu.CompilerParams(
            dimension_semantics=("parallel",),
            vmem_limit_bytes=vmem_limit),
    )(ids, *weights)

    return out.reshape(-1)[:batch]                # == .view(-1)


# ------------------------------ Parameters -----------------------------------
def init_ncf_params(key, num_users, num_items, embedding_dim=32,
                    hidden_dims=(64, 32, 16)):
    """Deterministic synthetic parameter init (shapes match the PyTorch module)."""
    keys = jax.random.split(key, 2 + 2 * (len(hidden_dims) + 1))
    k_iter = iter(keys)

    user_table = jax.random.normal(next(k_iter), (num_users, embedding_dim), jnp.float32)
    item_table = jax.random.normal(next(k_iter), (num_items, embedding_dim), jnp.float32)

    layer_params = []
    in_dim = embedding_dim * 2
    for h_dim in list(hidden_dims) + [1]:
        bound = 1.0 / jnp.sqrt(in_dim)
        w = jax.random.uniform(next(k_iter), (in_dim, h_dim), jnp.float32, -bound, bound)
        b = jax.random.uniform(next(k_iter), (1, h_dim), jnp.float32, -bound, bound)
        layer_params.append((w, b))
        in_dim = h_dim

    return user_table, item_table, tuple(layer_params)


# Pure-JAX reference for correctness checking.
def ncf_forward_ref(user_ids, item_ids, user_table, item_table, layer_params):
    user_emb = jnp.take(user_table, user_ids, axis=0)
    item_emb = jnp.take(item_table, item_ids, axis=0)
    x = jnp.concatenate([user_emb, item_emb], axis=-1)
    (w1, b1), (w2, b2), (w3, b3), (wo, bo) = layer_params
    h = jnp.maximum(x @ w1 + b1, 0.0)
    h = jnp.maximum(h @ w2 + b2, 0.0)
    h = jnp.maximum(h @ w3 + b3, 0.0)
    return (h @ wo + bo).reshape(-1)


if __name__ == "__main__":
    num_users, num_items = 50, 40
    embedding_dim = 32

    key = jax.random.PRNGKey(0)
    k_param, k_u, k_i = jax.random.split(key, 3)

    user_table, item_table, layer_params = init_ncf_params(
        k_param, num_users, num_items, embedding_dim)

    # Small batch: single grid step.
    batch = 8
    user_ids = jax.random.randint(k_u, (batch,), 0, num_users, dtype=jnp.int32)
    item_ids = jax.random.randint(k_i, (batch,), 0, num_items, dtype=jnp.int32)

    out = jax.block_until_ready(
        ncf_forward(user_ids, item_ids, user_table, item_table, layer_params))
    ref = ncf_forward_ref(user_ids, item_ids, user_table, item_table, layer_params)
    assert out.shape == (batch,)
    assert jnp.allclose(out, ref, atol=1e-3, rtol=1e-3), (out, ref)

    # Larger batch, not a multiple of the block size -> multi-step grid + padding.
    batch2 = 200
    u2 = jax.random.randint(jax.random.PRNGKey(1), (batch2,), 0, num_users, dtype=jnp.int32)
    i2 = jax.random.randint(jax.random.PRNGKey(2), (batch2,), 0, num_items, dtype=jnp.int32)
    out2 = jax.block_until_ready(
        ncf_forward(u2, i2, user_table, item_table, layer_params, block_b=64))
    ref2 = ncf_forward_ref(u2, i2, user_table, item_table, layer_params)
    assert out2.shape == (batch2,)
    assert jnp.allclose(out2, ref2, atol=1e-3, rtol=1e-3), (out2, ref2)

    # bf16 MXU-operand path (2x MXU rate on v6e/v7x, halved operand footprint);
    # looser tolerance because weights/tables are rounded to bf16.
    out3 = jax.block_until_ready(
        ncf_forward(u2, i2, user_table, item_table, layer_params,
                    mxu_dtype=jnp.bfloat16))
    assert out3.shape == (batch2,)
    assert jnp.allclose(out3, ref2, atol=1e-1, rtol=1e-1), (out3, ref2)

    print("KERNEL_OK")
</pallas_src>

<mosaic_0001>
module attributes {stable_mosaic.version = 11 : i64} {
  func.func @ncf_kernel(%arg0: i32, %arg1: memref<8x2xi32, #tpu.memory_space<vmem>>, %arg2: memref<90x64xf32, #tpu.memory_space<vmem>>, %arg3: memref<64x64xf32, #tpu.memory_space<vmem>>, %arg4: memref<1x64xf32, #tpu.memory_space<vmem>>, %arg5: memref<64x32xf32, #tpu.memory_space<vmem>>, %arg6: memref<1x32xf32, #tpu.memory_space<vmem>>, %arg7: memref<32x16xf32, #tpu.memory_space<vmem>>, %arg8: memref<1x16xf32, #tpu.memory_space<vmem>>, %arg9: memref<1x16xf32, #tpu.memory_space<vmem>>, %arg10: memref<1x1xf32, #tpu.memory_space<vmem>>, %arg11: memref<1x1x8xf32, #tpu.memory_space<vmem>>) attributes {dimension_semantics = [#tpu.dimension_semantics<parallel>], iteration_bounds = array<i64: 1>, scalar_prefetch = 0 : i64, scratch_operands = 0 : i64, tpu.core_type = #tpu.core_type<tc>, window_params = [{transform_indices = @transform_0, window_bounds = array<i64: 8, 2>}, {pipeline_mode = #tpu.pipeline_mode<synchronous>, transform_indices = @transform_1, window_bounds = array<i64: 90, 64>}, {pipeline_mode = #tpu.pipeline_mode<synchronous>, transform_indices = @transform_2, window_bounds = array<i64: 64, 64>}, {pipeline_mode = #tpu.pipeline_mode<synchronous>, transform_indices = @transform_3, window_bounds = array<i64: 1, 64>}, {pipeline_mode = #tpu.pipeline_mode<synchronous>, transform_indices = @transform_4, window_bounds = array<i64: 64, 32>}, {pipeline_mode = #tpu.pipeline_mode<synchronous>, transform_indices = @transform_5, window_bounds = array<i64: 1, 32>}, {pipeline_mode = #tpu.pipeline_mode<synchronous>, transform_indices = @transform_6, window_bounds = array<i64: 32, 16>}, {pipeline_mode = #tpu.pipeline_mode<synchronous>, transform_indices = @transform_7, window_bounds = array<i64: 1, 16>}, {pipeline_mode = #tpu.pipeline_mode<synchronous>, transform_indices = @transform_8, window_bounds = array<i64: 1, 16>}, {pipeline_mode = #tpu.pipeline_mode<synchronous>, transform_indices = @transform_9, window_bounds = array<i64: 1, 1>}, {transform_indices = @transform_10, window_bounds = array<i64: 1, 1, 8>}]} {
    %c0 = arith.constant 0 : index
    %c0_0 = arith.constant 0 : index
    %0 = vector.load %arg1[%c0, %c0_0] : memref<8x2xi32, #tpu.memory_space<vmem>>, vector<8x2xi32>
    %1 = vector.extract_strided_slice %0 {offsets = [0, 0], sizes = [8, 1], strides = [1, 1]} : vector<8x2xi32> to vector<8x1xi32>
    %2 = vector.extract_strided_slice %0 {offsets = [0, 1], sizes = [8, 1], strides = [1, 1]} : vector<8x2xi32> to vector<8x1xi32>
    %c50_i32 = arith.constant 50 : i32
    %3 = vector.broadcast %c50_i32 : i32 to vector<8x1xi32>
    %4 = arith.addi %2, %3 : vector<8x1xi32>
    %5 = tpu.iota {dimensions = array<i32: 1>} : vector<8x90xi32>
    %6 = vector.broadcast %1 : vector<8x1xi32> to vector<8x90xi32>
    %7 = arith.cmpi eq, %5, %6 : vector<8x90xi32>
    %8 = vector.broadcast %4 : vector<8x1xi32> to vector<8x90xi32>
    %9 = arith.cmpi eq, %5, %8 : vector<8x90xi32>
    %10 = arith.ori %7, %9 : vector<8x90xi1>
    %11 = arith.extui %10 : vector<8x90xi1> to vector<8x90xi32>
    %12 = arith.sitofp %11 : vector<8x90xi32> to vector<8x90xf32>
    %c0_1 = arith.constant 0 : index
    %c0_2 = arith.constant 0 : index
    %13 = vector.load %arg2[%c0_1, %c0_2] : memref<90x64xf32, #tpu.memory_space<vmem>>, vector<90x64xf32>
    %cst = arith.constant dense<0.000000e+00> : vector<8x64xf32>
    %14 = tpu.matmul %12, %13, %cst {dimension_numbers = #tpu.dot_dimension_numbers<[1], [0], [0], [1], [0, 0, 1, 1], [], []>} : vector<8x90xf32>, vector<90x64xf32>, vector<8x64xf32> -> vector<8x64xf32>
    %c0_3 = arith.constant 0 : index
    %c0_4 = arith.constant 0 : index
    %15 = vector.load %arg3[%c0_3, %c0_4] : memref<64x64xf32, #tpu.memory_space<vmem>>, vector<64x64xf32>
    %cst_5 = arith.constant dense<0.000000e+00> : vector<8x64xf32>
    %16 = tpu.matmul %14, %15, %cst_5 {dimension_numbers = #tpu.dot_dimension_numbers<[1], [0], [0], [1], [0, 0, 1, 1], [], []>} : vector<8x64xf32>, vector<64x64xf32>, vector<8x64xf32> -> vector<8x64xf32>
    %c0_6 = arith.constant 0 : index
    %c0_7 = arith.constant 0 : index
    %17 = vector.load %arg4[%c0_6, %c0_7] : memref<1x64xf32, #tpu.memory_space<vmem>>, vector<1x64xf32>
    %18 = vector.broadcast %17 : vector<1x64xf32> to vector<8x64xf32>
    %19 = arith.addf %16, %18 : vector<8x64xf32>
    %cst_8 = arith.constant 0.000000e+00 : f32
    %20 = vector.broadcast %cst_8 : f32 to vector<8x64xf32>
    %21 = arith.maximumf %19, %20 : vector<8x64xf32>
    %c0_9 = arith.constant 0 : index
    %c0_10 = arith.constant 0 : index
    %22 = vector.load %arg5[%c0_9, %c0_10] : memref<64x32xf32, #tpu.memory_space<vmem>>, vector<64x32xf32>
    %cst_11 = arith.constant dense<0.000000e+00> : vector<8x32xf32>
    %23 = tpu.matmul %21, %22, %cst_11 {dimension_numbers = #tpu.dot_dimension_numbers<[1], [0], [0], [1], [0, 0, 1, 1], [], []>} : vector<8x64xf32>, vector<64x32xf32>, vector<8x32xf32> -> vector<8x32xf32>
    %c0_12 = arith.constant 0 : index
    %c0_13 = arith.constant 0 : index
    %24 = vector.load %arg6[%c0_12, %c0_13] : memref<1x32xf32, #tpu.memory_space<vmem>>, vector<1x32xf32>
    %25 = vector.broadcast %24 : vector<1x32xf32> to vector<8x32xf32>
    %26 = arith.addf %23, %25 : vector<8x32xf32>
    %cst_14 = arith.constant 0.000000e+00 : f32
    %27 = vector.broadcast %cst_14 : f32 to vector<8x32xf32>
    %28 = arith.maximumf %26, %27 : vector<8x32xf32>
    %c0_15 = arith.constant 0 : index
    %c0_16 = arith.constant 0 : index
    %29 = vector.load %arg7[%c0_15, %c0_16] : memref<32x16xf32, #tpu.memory_space<vmem>>, vector<32x16xf32>
    %cst_17 = arith.constant dense<0.000000e+00> : vector<8x16xf32>
    %30 = tpu.matmul %28, %29, %cst_17 {dimension_numbers = #tpu.dot_dimension_numbers<[1], [0], [0], [1], [0, 0, 1, 1], [], []>} : vector<8x32xf32>, vector<32x16xf32>, vector<8x16xf32> -> vector<8x16xf32>
    %c0_18 = arith.constant 0 : index
    %c0_19 = arith.constant 0 : index
    %31 = vector.load %arg8[%c0_18, %c0_19] : memref<1x16xf32, #tpu.memory_space<vmem>>, vector<1x16xf32>
    %32 = vector.broadcast %31 : vector<1x16xf32> to vector<8x16xf32>
    %33 = arith.addf %30, %32 : vector<8x16xf32>
    %cst_20 = arith.constant 0.000000e+00 : f32
    %34 = vector.broadcast %cst_20 : f32 to vector<8x16xf32>
    %35 = arith.maximumf %33, %34 : vector<8x16xf32>
    %c0_21 = arith.constant 0 : index
    %c0_22 = arith.constant 0 : index
    %36 = vector.load %arg9[%c0_21, %c0_22] : memref<1x16xf32, #tpu.memory_space<vmem>>, vector<1x16xf32>
    "tpu.trace_start"() <{level = 10 : i32, message = "ok,bk->ob"}> : () -> ()
    %cst_23 = arith.constant dense<0.000000e+00> : vector<1x8xf32>
    %37 = tpu.matmul %36, %35, %cst_23 {dimension_numbers = #tpu.dot_dimension_numbers<[1], [1], [0], [0], [0, 0, 1, 0], [], []>} : vector<1x16xf32>, vector<8x16xf32>, vector<1x8xf32> -> vector<1x8xf32>
    "tpu.trace_stop"() : () -> ()
    %c0_24 = arith.constant 0 : index
    %c0_25 = arith.constant 0 : index
    %38 = vector.load %arg10[%c0_24, %c0_25] : memref<1x1xf32, #tpu.memory_space<vmem>>, vector<1x1xf32>
    %39 = vector.broadcast %38 : vector<1x1xf32> to vector<1x8xf32>
    %40 = arith.addf %37, %39 : vector<1x8xf32>
    %41 = vector.shape_cast %40 : vector<1x8xf32> to vector<1x1x8xf32>
    %c0_26 = arith.constant 0 : index
    %c0_27 = arith.constant 0 : index
    %c0_28 = arith.constant 0 : index
    %42 = vector.load %arg11[%c0_26, %c0_27, %c0_28] : memref<1x1x8xf32, #tpu.memory_space<vmem>>, vector<1x1x8xf32>
    tpu.vector_store %arg11[%c0_26, %c0_27, %c0_28], %41 {strides = array<i32>} : memref<1x1x8xf32, #tpu.memory_space<vmem>>, vector<1x1x8xf32>,
    return
  }
  func.func @transform_0(%arg0: i32) -> (i32, i32) {
    %c0_i32 = arith.constant 0 : i32
    %c0_i32_0 = arith.constant 0 : i32
    return %arg0, %c0_i32 : i32, i32
  }
  func.func @transform_1(%arg0: i32) -> (i32, i32) {
    %c0_i32 = arith.constant 0 : i32
    %c0_i32_0 = arith.constant 0 : i32
    %c0_i32_1 = arith.constant 0 : i32
    return %c0_i32, %c0_i32_0 : i32, i32
  }
  func.func @transform_2(%arg0: i32) -> (i32, i32) {
    %c0_i32 = arith.constant 0 : i32
    %c0_i32_0 = arith.constant 0 : i32
    %c0_i32_1 = arith.constant 0 : i32
    return %c0_i32, %c0_i32_0 : i32, i32
  }
  func.func @transform_3(%arg0: i32) -> (i32, i32) {
    %c0_i32 = arith.constant 0 : i32
    %c0_i32_0 = arith.constant 0 : i32
    %c0_i32_1 = arith.constant 0 : i32
    return %c0_i32, %c0_i32_0 : i32, i32
  }
  func.func @transform_4(%arg0: i32) -> (i32, i32) {
    %c0_i32 = arith.constant 0 : i32
    %c0_i32_0 = arith.constant 0 : i32
    %c0_i32_1 = arith.constant 0 : i32
    return %c0_i32, %c0_i32_0 : i32, i32
  }
  func.func @transform_5(%arg0: i32) -> (i32, i32) {
    %c0_i32 = arith.constant 0 : i32
    %c0_i32_0 = arith.constant 0 : i32
    %c0_i32_1 = arith.constant 0 : i32
    return %c0_i32, %c0_i32_0 : i32, i32
  }
  func.func @transform_6(%arg0: i32) -> (i32, i32) {
    %c0_i32 = arith.constant 0 : i32
    %c0_i32_0 = arith.constant 0 : i32
    %c0_i32_1 = arith.constant 0 : i32
    return %c0_i32, %c0_i32_0 : i32, i32
  }
  func.func @transform_7(%arg0: i32) -> (i32, i32) {
    %c0_i32 = arith.constant 0 : i32
    %c0_i32_0 = arith.constant 0 : i32
    %c0_i32_1 = arith.constant 0 : i32
    return %c0_i32, %c0_i32_0 : i32, i32
  }
  func.func @transform_8(%arg0: i32) -> (i32, i32) {
    %c0_i32 = arith.constant 0 : i32
    %c0_i32_0 = arith.constant 0 : i32
    %c0_i32_1 = arith.constant 0 : i32
    return %c0_i32, %c0_i32_0 : i32, i32
  }
  func.func @transform_9(%arg0: i32) -> (i32, i32) {
    %c0_i32 = arith.constant 0 : i32
    %c0_i32_0 = arith.constant 0 : i32
    %c0_i32_1 = arith.constant 0 : i32
    return %c0_i32, %c0_i32_0 : i32, i32
  }
  func.func @transform_10(%arg0: i32) -> (i32, i32, i32) {
    %c0_i32 = arith.constant 0 : i32
    %c0_i32_0 = arith.constant 0 : i32
    %c0_i32_1 = arith.constant 0 : i32
    return %arg0, %c0_i32, %c0_i32_0 : i32, i32, i32
  }
}

</mosaic_0001>

<llo_original>
// kernel: tpu_custom_call.1
$region0: #{tpu_custom_call.1}
  #allocation0 [shape = 'u32[]', space=smem, size = 0x4, offset = 0x4, fixed_abs, tag = 'smem constant byte address 0x4 - core index']
  #allocation1 [shape = 'u32[72,128]{1,0:T(1,128)}', space=vmem, size = 0x9000, scoped, tag = 'internal scratch']
  #allocation2 [shape = 'f32[1,1]{1,0:T(1,128)S(1)}', space=vmem, size = 0x200, scoped, tag = 'scoped memory for tpu_custom_call.1']
  %s0 = inlined_call_operand.vmem [shape: s32[8,2], index: 0, kind: input, shape index: {}]
  %s1 = inlined_call_operand.vmem [shape: f32[90,64], index: 1, kind: input, shape index: {}]
  %s2 = inlined_call_operand.vmem [shape: f32[64,64], index: 2, kind: input, shape index: {}]
  %s3 = inlined_call_operand.vmem [shape: f32[1,64], index: 3, kind: input, shape index: {}]
  %s4 = inlined_call_operand.vmem [shape: f32[64,32], index: 4, kind: input, shape index: {}]
  %s5 = inlined_call_operand.vmem [shape: f32[1,32], index: 5, kind: input, shape index: {}]
  %s6 = inlined_call_operand.vmem [shape: f32[32,16], index: 6, kind: input, shape index: {}]
  %s7 = inlined_call_operand.vmem [shape: f32[1,16], index: 7, kind: input, shape index: {}]
  %s8 = inlined_call_operand.vmem [shape: f32[1,16], index: 8, kind: input, shape index: {}]
  %s9 = inlined_call_operand.<no memory space> [shape: f32[1,1], index: 9, kind: input, shape index: {}]
  %s10 = inlined_call_operand.hbm [shape: f32[1,1,8], index: 10, kind: output, shape index: {}]
  %s11 = sld [smem:[#allocation0]]
  $region50: #{tpu_custom_call.1} parent=0
    _
  %s13 = ssub.s32 1, %s11
  %s14 = scalar_select 0, %s13, %s11
  %v15 = vstv %s9
  %16 = vst [vmem:[#allocation2] sm:$0x1] %v15
  $region1: #{tpu_custom_call.1} parent=0
    #allocation3 [shape = 'u8[512]{0}', space=vmem, size = 0x400, scoped, tag = 'output window, operand 0, single buffered']
    #allocation4 [shape = 's32[1]{0}', space=sflag, size = 0x4, scoped, tag = 'scoped memory for tpu_custom_call.1']
    %17 = vsyncpa [#allocation4], 0
    // Predicated region
    $region2: #{tpu_custom_call.1} parent=1 // pred_check
      _
    $region3: #{tpu_custom_call.1} parent=1 // pred_check_branch
      %19 = sbr.rel (0) target = $region5
    $region4: #{tpu_custom_call.1} parent=1 // pred_region
      _
    $region5: #{tpu_custom_call.1} parent=1 // pred_fallthru
      _
    // Predicated region
    $region6: #{tpu_custom_call.1} parent=1 // pred_check
      _
    $region7: #{tpu_custom_call.1} parent=1 // pred_check_branch
      %21 = sbr.rel (0) target = $region9
    $region8: #{tpu_custom_call.1} parent=1 // pred_region
      _
    $region9: #{tpu_custom_call.1} parent=1 // pred_fallthru
      _
    // Predicated region
    $region10: #{tpu_custom_call.1} parent=1 // pred_check
      _
    $region11: #{tpu_custom_call.1} parent=1 // pred_check_branch
      %23 = sbr.rel (0) target = $region13
    $region12: #{tpu_custom_call.1} parent=1 // pred_region
      _
    $region13: #{tpu_custom_call.1} parent=1 // pred_fallthru
      _
    // Predicated region
    $region14: #{tpu_custom_call.1} parent=1 // pred_check
      _
    $region15: #{tpu_custom_call.1} parent=1 // pred_check_branch
      %25 = sbr.rel (0) target = $region17
    $region16: #{tpu_custom_call.1} parent=1 // pred_region
      _
    $region17: #{tpu_custom_call.1} parent=1 // pred_fallthru
      _
    // Predicated region
    $region18: #{tpu_custom_call.1} parent=1 // pred_check
      _
    $region19: #{tpu_custom_call.1} parent=1 // pred_check_branch
      %27 = sbr.rel (0) target = $region21
    $region20: #{tpu_custom_call.1} parent=1 // pred_region
      _
    $region21: #{tpu_custom_call.1} parent=1 // pred_fallthru
      _
    // Predicated region
    $region22: #{tpu_custom_call.1} parent=1 // pred_check
      _
    $region23: #{tpu_custom_call.1} parent=1 // pred_check_branch
      %29 = sbr.rel (0) target = $region25
    $region24: #{tpu_custom_call.1} parent=1 // pred_region
      _
    $region25: #{tpu_custom_call.1} parent=1 // pred_fallthru
      _
    // Predicated region
    $region26: #{tpu_custom_call.1} parent=1 // pred_check
      _
    $region27: #{tpu_custom_call.1} parent=1 // pred_check_branch
      %31 = sbr.rel (0) target = $region29
    $region28: #{tpu_custom_call.1} parent=1 // pred_region
      _
    $region29: #{tpu_custom_call.1} parent=1 // pred_fallthru
      _
    // Predicated region
    $region30: #{tpu_custom_call.1} parent=1 // pred_check
      _
    $region31: #{tpu_custom_call.1} parent=1 // pred_check_branch
      %33 = sbr.rel (0) target = $region33
    $region32: #{tpu_custom_call.1} parent=1 // pred_region
      _
    $region33: #{tpu_custom_call.1} parent=1 // pred_fallthru
      _
    // Predicated region
    $region34: #{tpu_custom_call.1} parent=1 // pred_check
      _
    $region35: #{tpu_custom_call.1} parent=1 // pred_check_branch
      %35 = sbr.rel (0) target = $region37
    $region36: #{tpu_custom_call.1} parent=1 // pred_region
      _
    $region37: #{tpu_custom_call.1} parent=1 // pred_fallthru
      _
    // Predicated region
    $region38: #{tpu_custom_call.1} parent=1 // pred_check
      _
    $region39: #{tpu_custom_call.1} parent=1 // pred_check_branch
      %37 = sbr.rel (0) target = $region41
    $region40: #{tpu_custom_call.1} parent=1 // pred_region
      _
    $region41: #{tpu_custom_call.1} parent=1 // pred_fallthru
      _
    %v38 = vld [vmem:[%s0] sm:$0xff]
    %v39 = vadd.s32 %v38, 50
    %v40 = vlaneseq
    %v41 = vand.u32 %v40, 127
    %42 = vset.pattern.permute.xlu0 0
    %43 = vperm.xlu0 %42, %v38
    %v44 = vpop.permute.xlu0 %43
    %vm45 = vcmp.eq.s32.totalorder %v41, %v44
    %46 = vset.pattern.permute.xlu0 1
    %47 = vperm.xlu0 %46, %v39
    %v48 = vpop.permute.xlu0 %47
    %vm49 = vcmp.eq.s32.totalorder %v41, %v48
    %vm50 = vmor %vm45, %vm49
    %v51 = vsel %vm50, 1, 0
    %v52 = vcvt.s32.f32 %v51
    %v53 = vld [vmem:[%s1] sm:$0xff]
    %v54 = vld [vmem:[%s1 + $0x8] sm:$0xff]
    %v55 = vld [vmem:[%s1 + $0x10] sm:$0xff]
    %v56 = vld [vmem:[%s1 + $0x18] sm:$0xff]
    %v57 = vld [vmem:[%s1 + $0x20] sm:$0xff]
    %v58 = vld [vmem:[%s1 + $0x28] sm:$0xff]
    %v59 = vld [vmem:[%s1 + $0x30] sm:$0xff]
    %v60 = vld [vmem:[%s1 + $0x38] sm:$0xff]
    %v61 = vld [vmem:[%s1 + $0x40] sm:$0xff]
    %v62 = vld [vmem:[%s1 + $0x48] sm:$0xff]
    %v63 = vld [vmem:[%s1 + $0x50] sm:$0xff]
    %v64 = vld [vmem:[%s1 + $0x58] sm:$0x3]
    %vm65 = vcmask 736256
    %v67 = vsel %vm65, %v52, 0
    %vm69 = vcmask 1041408
    %v71 = vsel %vm69, %v64, 0
    %73 = vmatpush.msra.mxu0 0.0
    %74 = vmatpush.msra.mxu0 0.0
    %75 = vmatpush.msra.mxu0 0.0
    %76 = vmatpush.msra.mxu0 0.0
    %77 = vmatpush.msra.mxu0 %v71
    %78 = vmatpush.msra.mxu0 %v63
    %79 = vmatpush.msra.mxu0 %v62
    %80 = vmatpush.msra.mxu0 %v61
    %81 = vmatpush.msra.mxu0 %v60
    %82 = vmatpush.msra.mxu0 %v59
    %83 = vmatpush.msra.mxu0 %v58
    %84 = vmatpush.msra.mxu0 %v57
    %85 = vmatpush.msra.mxu0 %v56
    %86 = vmatpush.msra.mxu0 %v55
    %87 = vmatpush.msra.mxu0 %v54
    %88 = vmatpush.msra.mxu0 %v53
    %89 = vmatmul.f32.gmra.mxu0 %v67
    %v90 = vpop.f32.mrf.mxu0
    %v91 = vadd.f32 0.0, %v90
    %92 = vdwg.mxu0
    %v93 = vld [vmem:[%s2] sm:$0xff]
    %v94 = vld [vmem:[%s2 + $0x8] sm:$0xff]
    %v95 = vld [vmem:[%s2 + $0x10] sm:$0xff]
    %v96 = vld [vmem:[%s2 + $0x18] sm:$0xff]
    %v97 = vld [vmem:[%s2 + $0x20] sm:$0xff]
    %v98 = vld [vmem:[%s2 + $0x28] sm:$0xff]
    %v99 = vld [vmem:[%s2 + $0x30] sm:$0xff]
    %v100 = vld [vmem:[%s2 + $0x38] sm:$0xff]
    %v101 = vld [vmem:[%s3] sm:$0x1]
    %v103 = vperm.slane %v101, 0
    %vm105 = vcmask 523264
    %v107 = vsel %vm105, %v91, 0
    %109 = vmatpush.msra.mxu0 0.0
    %110 = vmatpush.msra.mxu0 0.0
    %111 = vmatpush.msra.mxu0 0.0
    %112 = vmatpush.msra.mxu0 0.0
    %113 = vmatpush.msra.mxu0 0.0
    %114 = vmatpush.msra.mxu0 0.0
    %115 = vmatpush.msra.mxu0 0.0
    %116 = vmatpush.msra.mxu0 0.0
    %117 = vmatpush.msra.mxu0 %v100
    %118 = vmatpush.msra.mxu0 %v99
    %119 = vmatpush.msra.mxu0 %v98
    %120 = vmatpush.msra.mxu0 %v97
    %121 = vmatpush.msra.mxu0 %v96
    %122 = vmatpush.msra.mxu0 %v95
    %123 = vmatpush.msra.mxu0 %v94
    %124 = vmatpush.msra.mxu0 %v93
    %125 = vmatmul.f32.gmra.mxu0 %v107
    %v126 = vpop.f32.mrf.mxu0
    %v127 = vadd.f32 %v103, %v126
    %128 = vdwg.mxu0
    %v129 = vmax.f32 %v127, 0.0
    %v130 = vld [vmem:[%s4] sm:$0xff]
    %v131 = vld [vmem:[%s4 + $0x8] sm:$0xff]
    %v132 = vld [vmem:[%s4 + $0x10] sm:$0xff]
    %v133 = vld [vmem:[%s4 + $0x18] sm:$0xff]
    %v134 = vld [vmem:[%s4 + $0x20] sm:$0xff]
    %v135 = vld [vmem:[%s4 + $0x28] sm:$0xff]
    %v136 = vld [vmem:[%s4 + $0x30] sm:$0xff]
    %v137 = vld [vmem:[%s4 + $0x38] sm:$0xff]
    %v138 = vld [vmem:[%s5] sm:$0x1]
    %v140 = vperm.slane %v138, 0
    %v143 = vsel %vm105, %v129, 0
    %145 = vmatpush.msra.mxu0 0.0
    %146 = vmatpush.msra.mxu0 0.0
    %147 = vmatpush.msra.mxu0 0.0
    %148 = vmatpush.msra.mxu0 0.0
    %149 = vmatpush.msra.mxu0 0.0
    %150 = vmatpush.msra.mxu0 0.0
    %151 = vmatpush.msra.mxu0 0.0
    %152 = vmatpush.msra.mxu0 0.0
    %153 = vmatpush.msra.mxu0 %v137
    %154 = vmatpush.msra.mxu0 %v136
    %155 = vmatpush.msra.mxu0 %v135
    %156 = vmatpush.msra.mxu0 %v134
    %157 = vmatpush.msra.mxu0 %v133
    %158 = vmatpush.msra.mxu0 %v132
    %159 = vmatpush.msra.mxu0 %v131
    %160 = vmatpush.msra.mxu0 %v130
    %161 = vmatmul.f32.gmra.mxu0 %v143
    %v162 = vpop.f32.mrf.mxu0
    %v163 = vadd.f32 %v140, %v162
    %164 = vdwg.mxu0
    %v165 = vmax.f32 %v163, 0.0
    %v166 = vld [vmem:[%s6] sm:$0xff]
    %v167 = vld [vmem:[%s6 + $0x8] sm:$0xff]
    %v168 = vld [vmem:[%s6 + $0x10] sm:$0xff]
    %v169 = vld [vmem:[%s6 + $0x18] sm:$0xff]
    %v170 = vld [vmem:[%s7] sm:$0x1]
    %v172 = vperm.slane %v170, 0
    %vm174 = vcmask 261120
    %v176 = vsel %vm174, %v165, 0
    %178 = vmatpush.msra.mxu0 0.0
    %179 = vmatpush.msra.mxu0 0.0
    %180 = vmatpush.msra.mxu0 0.0
    %181 = vmatpush.msra.mxu0 0.0
    %182 = vmatpush.msra.mxu0 0.0
    %183 = vmatpush.msra.mxu0 0.0
    %184 = vmatpush.msra.mxu0 0.0
    %185 = vmatpush.msra.mxu0 0.0
    %186 = vmatpush.msra.mxu0 0.0
    %187 = vmatpush.msra.mxu0 0.0
    %188 = vmatpush.msra.mxu0 0.0
    %189 = vmatpush.msra.mxu0 0.0
    %190 = vmatpush.msra.mxu0 %v169
    %191 = vmatpush.msra.mxu0 %v168
    %192 = vmatpush.msra.mxu0 %v167
    %193 = vmatpush.msra.mxu0 %v166
    %194 = vmatmul.f32.gmra.mxu0 %v176
    %v195 = vpop.f32.mrf.mxu0
    %v196 = vadd.f32 %v172, %v195
    %197 = vdwg.mxu0
    %v198 = vmax.f32 %v196, 0.0
    %v199 = vld [vmem:[%s8] sm:$0x1]
    %v200 = vld [vmem:[#allocation2] sm:$0x1]
    %202 = vset.pattern.permute.xlu0 0
    %203 = vperm.xlu0 %202, %v200
    %v204 = vpop.permute.xlu0 %203
    %v206 = vperm.slane %v204, 0
    %vm207 = vcmask 130048
    %v209 = vsel %vm207, %v199, 0
    %v212 = vsel %vm207, %v198, 0
    %214 = vmatpush.xpose.msra.mxu0 0.0
    %215 = vmatpush.xpose.msra.mxu0 0.0
    %216 = vmatpush.xpose.msra.mxu0 0.0
    %217 = vmatpush.xpose.msra.mxu0 0.0
    %218 = vmatpush.xpose.msra.mxu0 0.0
    %219 = vmatpush.xpose.msra.mxu0 0.0
    %220 = vmatpush.xpose.msra.mxu0 0.0
    %221 = vmatpush.xpose.msra.mxu0 0.0
    %222 = vmatpush.xpose.msra.mxu0 0.0
    %223 = vmatpush.xpose.msra.mxu0 0.0
    %224 = vmatpush.xpose.msra.mxu0 0.0
    %225 = vmatpush.xpose.msra.mxu0 0.0
    %226 = vmatpush.xpose.msra.mxu0 0.0
    %227 = vmatpush.xpose.msra.mxu0 0.0
    %228 = vmatpush.xpose.msra.mxu0 0.0
    %229 = vmatpush.xpose.msra.mxu0 %v212
    %230 = vmatmul.f32.gmra.mxu0 %v209
    %v231 = vpop.f32.mrf.mxu0
    %v232 = vadd.f32 %v206, %v231
    %233 = vdwg.mxu0
    %vm234 = vcmask 57344
    %235 = vst.msk [vmem:[#allocation3] sm:$0x1] %vm234, %v232
    // Predicated region
    $region42: #{tpu_custom_call.1} parent=1 // pred_check
      _
    $region43: #{tpu_custom_call.1} parent=1 // pred_check_branch
      %237 = sbr.rel (0) target = $region45
    $region44: #{tpu_custom_call.1} parent=1 // pred_region
      %239 = vsyncadd [#allocation4], 0
      %s241 = sshll.u32 [#allocation3], 4
      %s242 = int_to_ptr.vmem [resolvable:$true] %s241
      %s243 = sshll.u32 %s10, 4
      %s244 = int_to_ptr.hbm [resolvable:$true] %s243
      %246 = dma.vmem_to_hbm [thread:$0]  %s242, 16, %s244, [#allocation4]
    $region45: #{tpu_custom_call.1} parent=1 // pred_fallthru
      _
    // Predicated region
    $region46: #{tpu_custom_call.1} parent=1 // pred_check
      _
    $region47: #{tpu_custom_call.1} parent=1 // pred_check_branch
      %248 = sbr.rel (0) target = $region49
    $region48: #{tpu_custom_call.1} parent=1 // pred_region
      %250 = dma.done [#allocation4], 16
    $region49: #{tpu_custom_call.1} parent=1 // pred_fallthru
      _
    %251 = vsyncpa [#allocation4], 1

</llo_original>
